<compile_context>
chip_gen: v7x
topology: tpu7x:2x2x1
jax: 0.10.0
libtpu: 0.0.40
codegen_flags: <defaults>
</compile_context>

<pallas_src>
import jax
import jax.numpy as jnp
from jax.experimental import pallas as pl
from jax.experimental.pallas import tpu as pltpu


def _autoencoder_kernel(x_ref,
                        w1_ref, b1_ref,
                        w2_ref, b2_ref,
                        w3_ref, b3_ref,
                        w4_ref, b4_ref,
                        o_ref):
    # Feature-major: x_ref block is (10, TILE_L); batch rides the lane axis,
    # so every matmul / bias-add / relu / store is fully lane-dense.
    x = x_ref[...]

    # Hoist bias loads (JAX does not CSE broadcast_in_dim).
    b1 = b1_ref[...]
    b2 = b2_ref[...]
    b3 = b3_ref[...]
    b4 = b4_ref[...]

    # encoder: Linear(10,5) + ReLU        -> (5, TILE_L)
    h = jnp.maximum(
        jnp.dot(w1_ref[...], x, preferred_element_type=jnp.float32) + b1, 0.0)
    # encoder: Linear(5,3) + ReLU         -> (3, TILE_L)
    h = jnp.maximum(
        jnp.dot(w2_ref[...], h, preferred_element_type=jnp.float32) + b2, 0.0)
    # decoder: Linear(3,5) + ReLU         -> (5, TILE_L)
    h = jnp.maximum(
        jnp.dot(w3_ref[...], h, preferred_element_type=jnp.float32) + b3, 0.0)
    # decoder: Linear(5,10) + ReLU        -> (10, TILE_L)
    h = jnp.maximum(
        jnp.dot(w4_ref[...], h, preferred_element_type=jnp.float32) + b4, 0.0)

    o_ref[...] = h.astype(o_ref.dtype)


def _round_up(n, m):
    return (n + m - 1) // m * m


def autoencoder_forward_feature_major(xt, params, *, tile_l=16384):
    """xt: (10, batch) float32, feature-major. Returns (10, batch)."""
    feat, batch = xt.shape
    assert feat == 10, feat

    w1, b1, w2, b2, w3, b3, w4, b4 = (
        params["w1"], params["b1"], params["w2"], params["b2"],
        params["w3"], params["b3"], params["w4"], params["b4"],
    )

    # Lane tile: multiple of 128, no larger than needed.
    tile_l = max(128, _round_up(min(tile_l, batch), 128))
    # Guarantee >= 2 grid steps when the batch allows it (v7x megacore);
    # harmless on v5e/v6e (single TC).
    if pl.cdiv(batch, tile_l) < 2 and batch > 128:
        tile_l = _round_up(pl.cdiv(batch, 2), 128)
    padded = _round_up(batch, tile_l)
    if padded != batch:
        # Pad lanes in the wrapper so every grid step is a full, unmasked tile.
        xt = jnp.pad(xt, ((0, 0), (0, padded - batch)))
    grid = (padded // tile_l,)

    # Full-extent blocks with constant index maps: fetched once, not per step.
    def const_spec(a):
        return pl.BlockSpec(a.shape, lambda i, _nd=a.ndim: (0,) * _nd)

    weight_bytes = sum(int(a.size) * a.dtype.itemsize
                       for a in (w1, b1, w2, b2, w3, b3, w4, b4))
    flops = 2 * padded * (10 * 5 + 5 * 3 + 3 * 5 + 5 * 10)
    bytes_accessed = 2 * padded * 10 * 4 + weight_bytes

    out = pl.pallas_call(
        _autoencoder_kernel,
        out_shape=jax.ShapeDtypeStruct((10, padded), jnp.float32),
        grid=grid,
        in_specs=[pl.BlockSpec((10, tile_l), lambda i: (0, i)),
                  const_spec(w1), const_spec(b1),
                  const_spec(w2), const_spec(b2),
                  const_spec(w3), const_spec(b3),
                  const_spec(w4), const_spec(b4)],
        out_specs=pl.BlockSpec((10, tile_l), lambda i: (0, i)),
        compiler_params=pltpu.CompilerParams(
            dimension_semantics=("parallel",)),
        cost_estimate=pl.CostEstimate(flops=flops,
                                      transcendentals=0,
                                      bytes_accessed=bytes_accessed),
    )(xt, w1, b1, w2, b2, w3, b3, w4, b4)

    if padded != batch:
        out = out[:, :batch]
    return out


def autoencoder_forward(x, params, *, tile_l=16384):
    """PyTorch-layout entry point. x: (batch, 10) float32 -> (batch, 10).

    Densifies to feature-major around the Pallas call; callers that can keep
    activations feature-major should use autoencoder_forward_feature_major
    directly and skip both transposes.
    """
    batch, feat = x.shape
    assert feat == 10, feat
    out_t = autoencoder_forward_feature_major(x.T, params, tile_l=tile_l)
    return out_t.T


def init_params(key):
    """Deterministic init mimicking nn.Linear's U(-1/sqrt(fan_in), 1/sqrt(fan_in)).
    Weights stored in PyTorch-native (out, in); biases as (out, 1) for
    feature-major in-kernel broadcast."""
    dims = [(10, 5), (5, 3), (3, 5), (5, 10)]
    params = {}
    for i, (fan_in, fan_out) in enumerate(dims, start=1):
        key, kw, kb = jax.random.split(key, 3)
        bound = 1.0 / jnp.sqrt(float(fan_in))
        params[f"w{i}"] = jax.random.uniform(
            kw, (fan_out, fan_in), jnp.float32, minval=-bound, maxval=bound)
        params[f"b{i}"] = jax.random.uniform(
            kb, (fan_out, 1), jnp.float32, minval=-bound, maxval=bound)
    return params


def _reference_forward(x, p):
    """Pure-JAX reference, PyTorch layout: h = relu(x @ W.T + b)."""
    h = jnp.maximum(x @ p["w1"].T + p["b1"][:, 0], 0.0)
    h = jnp.maximum(h @ p["w2"].T + p["b2"][:, 0], 0.0)
    h = jnp.maximum(h @ p["w3"].T + p["b3"][:, 0], 0.0)
    h = jnp.maximum(h @ p["w4"].T + p["b4"][:, 0], 0.0)
    return h


if __name__ == "__main__":
    key = jax.random.PRNGKey(0)
    key, kx = jax.random.split(key)

    # Small demo shape. batch=300 is not a multiple of 128, so it exercises
    # the lane-padding path; the tile selector picks TILE_L=256 -> grid=(2,),
    # exercising pipelining, constant weight blocks, and megacore-eligible
    # parallel grid steps. Production callers keep the default tile_l=16384.
    batch = 300
    x = jax.random.normal(kx, (batch, 10), jnp.float32)
    params = init_params(key)

    out = autoencoder_forward(x, params)
    out = jax.block_until_ready(out)

    ref = _reference_forward(x, params)
    assert out.shape == (batch, 10), out.shape
    assert jnp.allclose(out, ref, atol=1e-5, rtol=1e-5), "mismatch vs reference"

    print("KERNEL_OK")
</pallas_src>

<mosaic_0001>
module attributes {stable_mosaic.version = 11 : i64} {
  func.func @_autoencoder_kernel(%arg0: i32, %arg1: memref<10x256xf32, #tpu.memory_space<vmem>>, %arg2: memref<5x10xf32, #tpu.memory_space<vmem>>, %arg3: memref<5x1xf32, #tpu.memory_space<vmem>>, %arg4: memref<3x5xf32, #tpu.memory_space<vmem>>, %arg5: memref<3x1xf32, #tpu.memory_space<vmem>>, %arg6: memref<5x3xf32, #tpu.memory_space<vmem>>, %arg7: memref<5x1xf32, #tpu.memory_space<vmem>>, %arg8: memref<10x5xf32, #tpu.memory_space<vmem>>, %arg9: memref<10x1xf32, #tpu.memory_space<vmem>>, %arg10: memref<10x256xf32, #tpu.memory_space<vmem>>) attributes {dimension_semantics = [#tpu.dimension_semantics<parallel>], iteration_bounds = array<i64: 2>, scalar_prefetch = 0 : i64, scratch_operands = 0 : i64, tpu.core_type = #tpu.core_type<tc>, window_params = [{transform_indices = @transform_0, window_bounds = array<i64: 10, 256>}, {pipeline_mode = #tpu.pipeline_mode<synchronous>, transform_indices = @transform_1, window_bounds = array<i64: 5, 10>}, {pipeline_mode = #tpu.pipeline_mode<synchronous>, transform_indices = @transform_2, window_bounds = array<i64: 5, 1>}, {pipeline_mode = #tpu.pipeline_mode<synchronous>, transform_indices = @transform_3, window_bounds = array<i64: 3, 5>}, {pipeline_mode = #tpu.pipeline_mode<synchronous>, transform_indices = @transform_4, window_bounds = array<i64: 3, 1>}, {pipeline_mode = #tpu.pipeline_mode<synchronous>, transform_indices = @transform_5, window_bounds = array<i64: 5, 3>}, {pipeline_mode = #tpu.pipeline_mode<synchronous>, transform_indices = @transform_6, window_bounds = array<i64: 5, 1>}, {pipeline_mode = #tpu.pipeline_mode<synchronous>, transform_indices = @transform_7, window_bounds = array<i64: 10, 5>}, {pipeline_mode = #tpu.pipeline_mode<synchronous>, transform_indices = @transform_8, window_bounds = array<i64: 10, 1>}, {transform_indices = @transform_9, window_bounds = array<i64: 10, 256>}]} {
    %c0 = arith.constant 0 : index
    %c0_0 = arith.constant 0 : index
    %0 = vector.load %arg1[%c0, %c0_0] : memref<10x256xf32, #tpu.memory_space<vmem>>, vector<10x256xf32>
    %c0_1 = arith.constant 0 : index
    %c0_2 = arith.constant 0 : index
    %1 = vector.load %arg3[%c0_1, %c0_2] : memref<5x1xf32, #tpu.memory_space<vmem>>, vector<5x1xf32>
    %c0_3 = arith.constant 0 : index
    %c0_4 = arith.constant 0 : index
    %2 = vector.load %arg5[%c0_3, %c0_4] : memref<3x1xf32, #tpu.memory_space<vmem>>, vector<3x1xf32>
    %c0_5 = arith.constant 0 : index
    %c0_6 = arith.constant 0 : index
    %3 = vector.load %arg7[%c0_5, %c0_6] : memref<5x1xf32, #tpu.memory_space<vmem>>, vector<5x1xf32>
    %c0_7 = arith.constant 0 : index
    %c0_8 = arith.constant 0 : index
    %4 = vector.load %arg9[%c0_7, %c0_8] : memref<10x1xf32, #tpu.memory_space<vmem>>, vector<10x1xf32>
    %c0_9 = arith.constant 0 : index
    %c0_10 = arith.constant 0 : index
    %5 = vector.load %arg2[%c0_9, %c0_10] : memref<5x10xf32, #tpu.memory_space<vmem>>, vector<5x10xf32>
    %cst = arith.constant dense<0.000000e+00> : vector<5x256xf32>
    %6 = tpu.matmul %5, %0, %cst {dimension_numbers = #tpu.dot_dimension_numbers<[1], [0], [0], [1], [0, 0, 1, 1], [], []>} : vector<5x10xf32>, vector<10x256xf32>, vector<5x256xf32> -> vector<5x256xf32>
    %7 = vector.broadcast %1 : vector<5x1xf32> to vector<5x256xf32>
    %8 = arith.addf %6, %7 : vector<5x256xf32>
    %cst_11 = arith.constant 0.000000e+00 : f32
    %9 = vector.broadcast %cst_11 : f32 to vector<5x256xf32>
    %10 = arith.maximumf %8, %9 : vector<5x256xf32>
    %c0_12 = arith.constant 0 : index
    %c0_13 = arith.constant 0 : index
    %11 = vector.load %arg4[%c0_12, %c0_13] : memref<3x5xf32, #tpu.memory_space<vmem>>, vector<3x5xf32>
    %cst_14 = arith.constant dense<0.000000e+00> : vector<3x256xf32>
    %12 = tpu.matmul %11, %10, %cst_14 {dimension_numbers = #tpu.dot_dimension_numbers<[1], [0], [0], [1], [0, 0, 1, 1], [], []>} : vector<3x5xf32>, vector<5x256xf32>, vector<3x256xf32> -> vector<3x256xf32>
    %13 = vector.broadcast %2 : vector<3x1xf32> to vector<3x256xf32>
    %14 = arith.addf %12, %13 : vector<3x256xf32>
    %cst_15 = arith.constant 0.000000e+00 : f32
    %15 = vector.broadcast %cst_15 : f32 to vector<3x256xf32>
    %16 = arith.maximumf %14, %15 : vector<3x256xf32>
    %c0_16 = arith.constant 0 : index
    %c0_17 = arith.constant 0 : index
    %17 = vector.load %arg6[%c0_16, %c0_17] : memref<5x3xf32, #tpu.memory_space<vmem>>, vector<5x3xf32>
    %cst_18 = arith.constant dense<0.000000e+00> : vector<5x256xf32>
    %18 = tpu.matmul %17, %16, %cst_18 {dimension_numbers = #tpu.dot_dimension_numbers<[1], [0], [0], [1], [0, 0, 1, 1], [], []>} : vector<5x3xf32>, vector<3x256xf32>, vector<5x256xf32> -> vector<5x256xf32>
    %19 = vector.broadcast %3 : vector<5x1xf32> to vector<5x256xf32>
    %20 = arith.addf %18, %19 : vector<5x256xf32>
    %cst_19 = arith.constant 0.000000e+00 : f32
    %21 = vector.broadcast %cst_19 : f32 to vector<5x256xf32>
    %22 = arith.maximumf %20, %21 : vector<5x256xf32>
    %c0_20 = arith.constant 0 : index
    %c0_21 = arith.constant 0 : index
    %23 = vector.load %arg8[%c0_20, %c0_21] : memref<10x5xf32, #tpu.memory_space<vmem>>, vector<10x5xf32>
    %cst_22 = arith.constant dense<0.000000e+00> : vector<10x256xf32>
    %24 = tpu.matmul %23, %22, %cst_22 {dimension_numbers = #tpu.dot_dimension_numbers<[1], [0], [0], [1], [0, 0, 1, 1], [], []>} : vector<10x5xf32>, vector<5x256xf32>, vector<10x256xf32> -> vector<10x256xf32>
    %25 = vector.broadcast %4 : vector<10x1xf32> to vector<10x256xf32>
    %26 = arith.addf %24, %25 : vector<10x256xf32>
    %cst_23 = arith.constant 0.000000e+00 : f32
    %27 = vector.broadcast %cst_23 : f32 to vector<10x256xf32>
    %28 = arith.maximumf %26, %27 : vector<10x256xf32>
    %c0_24 = arith.constant 0 : index
    %c0_25 = arith.constant 0 : index
    %29 = vector.load %arg10[%c0_24, %c0_25] : memref<10x256xf32, #tpu.memory_space<vmem>>, vector<10x256xf32>
    tpu.vector_store %arg10[%c0_24, %c0_25], %28 {strides = array<i32>} : memref<10x256xf32, #tpu.memory_space<vmem>>, vector<10x256xf32>,
    return
  }
  func.func @transform_0(%arg0: i32) -> (i32, i32) {
    %c0_i32 = arith.constant 0 : i32
    %c0_i32_0 = arith.constant 0 : i32
    return %c0_i32, %arg0 : i32, i32
  }
  func.func @transform_1(%arg0: i32) -> (i32, i32) {
    %c0_i32 = arith.constant 0 : i32
    %c0_i32_0 = arith.constant 0 : i32
    %c0_i32_1 = arith.constant 0 : i32
    return %c0_i32, %c0_i32_0 : i32, i32
  }
  func.func @transform_2(%arg0: i32) -> (i32, i32) {
    %c0_i32 = arith.constant 0 : i32
    %c0_i32_0 = arith.constant 0 : i32
    %c0_i32_1 = arith.constant 0 : i32
    return %c0_i32, %c0_i32_0 : i32, i32
  }
  func.func @transform_3(%arg0: i32) -> (i32, i32) {
    %c0_i32 = arith.constant 0 : i32
    %c0_i32_0 = arith.constant 0 : i32
    %c0_i32_1 = arith.constant 0 : i32
    return %c0_i32, %c0_i32_0 : i32, i32
  }
  func.func @transform_4(%arg0: i32) -> (i32, i32) {
    %c0_i32 = arith.constant 0 : i32
    %c0_i32_0 = arith.constant 0 : i32
    %c0_i32_1 = arith.constant 0 : i32
    return %c0_i32, %c0_i32_0 : i32, i32
  }
  func.func @transform_5(%arg0: i32) -> (i32, i32) {
    %c0_i32 = arith.constant 0 : i32
    %c0_i32_0 = arith.constant 0 : i32
    %c0_i32_1 = arith.constant 0 : i32
    return %c0_i32, %c0_i32_0 : i32, i32
  }
  func.func @transform_6(%arg0: i32) -> (i32, i32) {
    %c0_i32 = arith.constant 0 : i32
    %c0_i32_0 = arith.constant 0 : i32
    %c0_i32_1 = arith.constant 0 : i32
    return %c0_i32, %c0_i32_0 : i32, i32
  }
  func.func @transform_7(%arg0: i32) -> (i32, i32) {
    %c0_i32 = arith.constant 0 : i32
    %c0_i32_0 = arith.constant 0 : i32
    %c0_i32_1 = arith.constant 0 : i32
    return %c0_i32, %c0_i32_0 : i32, i32
  }
  func.func @transform_8(%arg0: i32) -> (i32, i32) {
    %c0_i32 = arith.constant 0 : i32
    %c0_i32_0 = arith.constant 0 : i32
    %c0_i32_1 = arith.constant 0 : i32
    return %c0_i32, %c0_i32_0 : i32, i32
  }
  func.func @transform_9(%arg0: i32) -> (i32, i32) {
    %c0_i32 = arith.constant 0 : i32
    %c0_i32_0 = arith.constant 0 : i32
    return %c0_i32, %arg0 : i32, i32
  }
}

</mosaic_0001>

<llo_original>
// kernel: tpu_custom_call.1
$region0: #{tpu_custom_call.1}
  #allocation0 [shape = 'u32[]', space=smem, size = 0x4, offset = 0x4, fixed_abs, tag = 'smem constant byte address 0x4 - core index']
  #allocation1 [shape = 'u32[144,128]{1,0:T(1,128)}', space=vmem, size = 0x12000, scoped, tag = 'internal scratch']
  %s0 = inlined_call_operand.vmem [shape: f32[10,512], index: 0, kind: input, shape index: {}]
  %s1 = inlined_call_operand.hbm [shape: f32[5,10], index: 1, kind: input, shape index: {}]
  %s2 = inlined_call_operand.vmem [shape: f32[5,1], index: 2, kind: input, shape index: {}]
  %s3 = inlined_call_operand.vmem [shape: f32[3,5], index: 3, kind: input, shape index: {}]
  %s4 = inlined_call_operand.vmem [shape: f32[3,1], index: 4, kind: input, shape index: {}]
  %s5 = inlined_call_operand.vmem [shape: f32[5,3], index: 5, kind: input, shape index: {}]
  %s6 = inlined_call_operand.vmem [shape: f32[5,1], index: 6, kind: input, shape index: {}]
  %s7 = inlined_call_operand.vmem [shape: f32[10,5], index: 7, kind: input, shape index: {}]
  %s8 = inlined_call_operand.vmem [shape: f32[10,1], index: 8, kind: input, shape index: {}]
  %s9 = inlined_call_operand.hbm [shape: f32[10,512], index: 9, kind: output, shape index: {}]
  %s10 = sld [smem:[#allocation0]]
  $region96: #{tpu_custom_call.1} parent=0
    _
  %s12 = ssub.s32 1, %s10
  %s13 = scalar_select 0, %s12, %s10
  $region1: #{tpu_custom_call.1} parent=0
    #allocation2 [shape = 'u8[32768]{0}', space=vmem, size = 0x8000, scoped, tag = 'input window, operand 0']
    #allocation3 [shape = 'u8[4096]{0}', space=vmem, size = 0x1000, scoped, tag = 'input window, operand 1, single buffered']
    #allocation4 [shape = 's32[2]{0}', space=sflag, size = 0x8, scoped, tag = 'scoped memory for tpu_custom_call.1']
    #allocation5 [shape = 's32[2]{0}', space=sflag, size = 0x8, scoped, tag = 'scoped memory for tpu_custom_call.1']
    #allocation6 [shape = 'u8[32768]{0}', space=vmem, size = 0x8000, scoped, tag = 'output window, operand 0']
    %14 = vsyncpa [#allocation4], 0
    %15 = vsyncpa [#allocation5], 0
    %s16 = scalar_lea.sflag [#allocation5], 1
    %17 = vsyncpa %s16, 0
    loop: start=0, step=1, limit=4
    $region2: #{tpu_custom_call.1} parent=1 // loop_pre_header
      _
    $region3: #{tpu_custom_call.1} parent=1 // loop_header
      %s19 = sphi 0, %s23
      %p20 = scmp.ge.s32.totalorder %s19, 4
      %s29 = sphi 0, %s31
      %s32 = sphi 0, %s29
      %s33 = sphi 0, %s32
      %s49 = sphi 0, %s33
      %s53 = sphi 0, %s53
      %s55 = sphi 0, %s53
      %s56 = sphi 0, %s55
      %s70 = sphi 0, %s56
      %s74 = sphi 0, %s74
      %s76 = sphi 0, %s74
      %s77 = sphi 0, %s76
      %s91 = sphi 0, %s77
      %s95 = sphi 0, %s95
      %s97 = sphi 0, %s95
      %s98 = sphi 0, %s97
      %s112 = sphi 0, %s98
      %s116 = sphi 0, %s116
      %s118 = sphi 0, %s116
      %s119 = sphi 0, %s118
      %s133 = sphi 0, %s119
      %s137 = sphi 0, %s137
      %s139 = sphi 0, %s137
      %s140 = sphi 0, %s139
      %s154 = sphi 0, %s140
      %s158 = sphi 0, %s158
      %s160 = sphi 0, %s158
      %s161 = sphi 0, %s160
      %s175 = sphi 0, %s161
      %s179 = sphi 0, %s179
      %s181 = sphi 0, %s179
      %s182 = sphi 0, %s181
      %s196 = sphi 0, %s182
      %s200 = sphi 0, %s200
      %s202 = sphi 0, %s200
      %s203 = sphi 0, %s202
      %s217 = sphi 0, %s203
      %s223 = sphi 0, %s225
      %s226 = sphi 0, %s223
      %s227 = sphi 0, %s226
      %s243 = sphi 0, %s227
    $region4: #{tpu_custom_call.1} parent=1 // loop_header_branch
      %22 = sbr.rel (%p20) target = $region8
    $region5: #{tpu_custom_call.1} parent=1 // loop_body
      %s24 = ssub.s32 %s19, 1
      %s25 = ssub.s32 %s19, 2
      %s26 = sadd.s32 %s19, 1
      %s27 = ssub.s32 %s19, %s26
      %p28 = scmp.eq.s32.totalorder %s27, 0
      %s30 = sadd.s32 %s29, 1
      %s31 = scalar_select %p28, %s29, %s30
      %p34 = pneg %p28
      %p35 = scmp.eq.s32.totalorder %s19, 1
      %p36 = por %p34, %p35
      %p37 = scmp.ne.s32.totalorder %s29, %s32
      %p38 = scmp.eq.s32.totalorder %s19, 0
      %p39 = por %p37, %p38
      %p40 = scmp.ne.s32.totalorder %s29, %s32
      %p41 = scmp.eq.s32.totalorder %s24, 1
      %p42 = por %p40, %p41
      %p43 = scmp.ne.s32.totalorder %s32, %s33
      %p44 = scmp.eq.s32.totalorder %s24, 0
      %p45 = por %p43, %p44
      %p46 = scmp.ne.s32.totalorder %s32, %s33
      %p47 = scmp.eq.s32.totalorder %s25, 1
      %p48 = por %p46, %p47
      %p50 = scmp.ne.s32.totalorder %s33, %s49
      %p51 = scmp.eq.s32.totalorder %s25, 0
      %p52 = por %p50, %p51
      %s54 = sadd.s32 %s53, 1
      %p57 = scmp.eq.s32.totalorder %s19, 1
      %p58 = scmp.ne.s32.totalorder %s53, %s55
      %p59 = scmp.eq.s32.totalorder %s19, 0
      %p60 = por %p58, %p59
      %p61 = scmp.ne.s32.totalorder %s53, %s55
      %p62 = scmp.eq.s32.totalorder %s24, 1
      %p63 = por %p61, %p62
      %p64 = scmp.ne.s32.totalorder %s55, %s56
      %p65 = scmp.eq.s32.totalorder %s24, 0
      %p66 = por %p64, %p65
      %p67 = scmp.ne.s32.totalorder %s55, %s56
      %p68 = scmp.eq.s32.totalorder %s25, 1
      %p69 = por %p67, %p68
      %p71 = scmp.ne.s32.totalorder %s56, %s70
      %p72 = scmp.eq.s32.totalorder %s25, 0
      %p73 = por %p71, %p72
      %s75 = sadd.s32 %s74, 1
      %p78 = scmp.eq.s32.totalorder %s19, 1
      %p79 = scmp.ne.s32.totalorder %s74, %s76
      %p80 = scmp.eq.s32.totalorder %s19, 0
      %p81 = por %p79, %p80
      %p82 = scmp.ne.s32.totalorder %s74, %s76
      %p83 = scmp.eq.s32.totalorder %s24, 1
      %p84 = por %p82, %p83
      %p85 = scmp.ne.s32.totalorder %s76, %s77
      %p86 = scmp.eq.s32.totalorder %s24, 0
      %p87 = por %p85, %p86
      %p88 = scmp.ne.s32.totalorder %s76, %s77
      %p89 = scmp.eq.s32.totalorder %s25, 1
      %p90 = por %p88, %p89
      %p92 = scmp.ne.s32.totalorder %s77, %s91
      %p93 = scmp.eq.s32.totalorder %s25, 0
      %p94 = por %p92, %p93
      %s96 = sadd.s32 %s95, 1
      %p99 = scmp.eq.s32.totalorder %s19, 1
      %p100 = scmp.ne.s32.totalorder %s95, %s97
      %p101 = scmp.eq.s32.totalorder %s19, 0
      %p102 = por %p100, %p101
      %p103 = scmp.ne.s32.totalorder %s95, %s97
      %p104 = scmp.eq.s32.totalorder %s24, 1
      %p105 = por %p103, %p104
      %p106 = scmp.ne.s32.totalorder %s97, %s98
      %p107 = scmp.eq.s32.totalorder %s24, 0
      %p108 = por %p106, %p107
      %p109 = scmp.ne.s32.totalorder %s97, %s98
      %p110 = scmp.eq.s32.totalorder %s25, 1
      %p111 = por %p109, %p110
      %p113 = scmp.ne.s32.totalorder %s98, %s112
      %p114 = scmp.eq.s32.totalorder %s25, 0
      %p115 = por %p113, %p114
      %s117 = sadd.s32 %s116, 1
      %p120 = scmp.eq.s32.totalorder %s19, 1
      %p121 = scmp.ne.s32.totalorder %s116, %s118
      %p122 = scmp.eq.s32.totalorder %s19, 0
      %p123 = por %p121, %p122
      %p124 = scmp.ne.s32.totalorder %s116, %s118
      %p125 = scmp.eq.s32.totalorder %s24, 1
      %p126 = por %p124, %p125
      %p127 = scmp.ne.s32.totalorder %s118, %s119
      %p128 = scmp.eq.s32.totalorder %s24, 0
      %p129 = por %p127, %p128
      %p130 = scmp.ne.s32.totalorder %s118, %s119
      %p131 = scmp.eq.s32.totalorder %s25, 1
      %p132 = por %p130, %p131
      %p134 = scmp.ne.s32.totalorder %s119, %s133
      %p135 = scmp.eq.s32.totalorder %s25, 0
      %p136 = por %p134, %p135
      %s138 = sadd.s32 %s137, 1
      %p141 = scmp.eq.s32.totalorder %s19, 1
      %p142 = scmp.ne.s32.totalorder %s137, %s139
      %p143 = scmp.eq.s32.totalorder %s19, 0
      %p144 = por %p142, %p143
      %p145 = scmp.ne.s32.totalorder %s137, %s139
      %p146 = scmp.eq.s32.totalorder %s24, 1
      %p147 = por %p145, %p146
      %p148 = scmp.ne.s32.totalorder %s139, %s140
      %p149 = scmp.eq.s32.totalorder %s24, 0
      %p150 = por %p148, %p149
      %p151 = scmp.ne.s32.totalorder %s139, %s140
      %p152 = scmp.eq.s32.totalorder %s25, 1
      %p153 = por %p151, %p152
      %p155 = scmp.ne.s32.totalorder %s140, %s154
      %p156 = scmp.eq.s32.totalorder %s25, 0
      %p157 = por %p155, %p156
      %s159 = sadd.s32 %s158, 1
      %p162 = scmp.eq.s32.totalorder %s19, 1
      %p163 = scmp.ne.s32.totalorder %s158, %s160
      %p164 = scmp.eq.s32.totalorder %s19, 0
      %p165 = por %p163, %p164
      %p166 = scmp.ne.s32.totalorder %s158, %s160
      %p167 = scmp.eq.s32.totalorder %s24, 1
      %p168 = por %p166, %p167
      %p169 = scmp.ne.s32.totalorder %s160, %s161
      %p170 = scmp.eq.s32.totalorder %s24, 0
      %p171 = por %p169, %p170
      %p172 = scmp.ne.s32.totalorder %s160, %s161
      %p173 = scmp.eq.s32.totalorder %s25, 1
      %p174 = por %p172, %p173
      %p176 = scmp.ne.s32.totalorder %s161, %s175
      %p177 = scmp.eq.s32.totalorder %s25, 0
      %p178 = por %p176, %p177
      %s180 = sadd.s32 %s179, 1
      %p183 = scmp.eq.s32.totalorder %s19, 1
      %p184 = scmp.ne.s32.totalorder %s179, %s181
      %p185 = scmp.eq.s32.totalorder %s19, 0
      %p186 = por %p184, %p185
      %p187 = scmp.ne.s32.totalorder %s179, %s181
      %p188 = scmp.eq.s32.totalorder %s24, 1
      %p189 = por %p187, %p188
      %p190 = scmp.ne.s32.totalorder %s181, %s182
      %p191 = scmp.eq.s32.totalorder %s24, 0
      %p192 = por %p190, %p191
      %p193 = scmp.ne.s32.totalorder %s181, %s182
      %p194 = scmp.eq.s32.totalorder %s25, 1
      %p195 = por %p193, %p194
      %p197 = scmp.ne.s32.totalorder %s182, %s196
      %p198 = scmp.eq.s32.totalorder %s25, 0
      %p199 = por %p197, %p198
      %s201 = sadd.s32 %s200, 1
      %p204 = scmp.eq.s32.totalorder %s19, 1
      %p205 = scmp.ne.s32.totalorder %s200, %s202
      %p206 = scmp.eq.s32.totalorder %s19, 0
      %p207 = por %p205, %p206
      %p208 = scmp.ne.s32.totalorder %s200, %s202
      %p209 = scmp.eq.s32.totalorder %s24, 1
      %p210 = por %p208, %p209
      %p211 = scmp.ne.s32.totalorder %s202, %s203
      %p212 = scmp.eq.s32.totalorder %s24, 0
      %p213 = por %p211, %p212
      %p214 = scmp.ne.s32.totalorder %s202, %s203
      %p215 = scmp.eq.s32.totalorder %s25, 1
      %p216 = por %p214, %p215
      %p218 = scmp.ne.s32.totalorder %s203, %s217
      %p219 = scmp.eq.s32.totalorder %s25, 0
      %p220 = por %p218, %p219
      %s221 = ssub.s32 %s19, %s26
      %p222 = scmp.eq.s32.totalorder %s221, 0
      %s224 = sadd.s32 %s223, 1
      %s225 = scalar_select %p222, %s223, %s224
      %p228 = pneg %p222
      %p229 = scmp.eq.s32.totalorder %s19, 1
      %p230 = por %p228, %p229
      %p231 = scmp.ne.s32.totalorder %s223, %s226
      %p232 = scmp.eq.s32.totalorder %s19, 0
      %p233 = por %p231, %p232
      %p234 = scmp.ne.s32.totalorder %s223, %s226
      %p235 = scmp.eq.s32.totalorder %s24, 1
      %p236 = por %p234, %p235
      %p237 = scmp.ne.s32.totalorder %s226, %s227
      %p238 = scmp.eq.s32.totalorder %s24, 0
      %p239 = por %p237, %p238
      %p240 = scmp.ne.s32.totalorder %s226, %s227
      %p241 = scmp.eq.s32.totalorder %s25, 1
      %p242 = por %p240, %p241
      %p244 = scmp.ne.s32.totalorder %s227, %s243
      %p245 = scmp.eq.s32.totalorder %s25, 0
      %p246 = por %p244, %p245
      %p247 = scmp.le.s32.totalorder 1, %s19
      %p248 = scmp.lt.s32.totalorder %s19, 3
      %p249 = pnand %p247, %p248
      %p250 = pneg %p249
      // Predicated region
      $region9: #{tpu_custom_call.1} parent=5 // pred_check
        _
      $region10: #{tpu_custom_call.1} parent=5 // pred_check_branch
        %252 = sbr.rel (%p249) target = $region12
      $region11: #{tpu_custom_call.1} parent=5 // pred_region
        %s253 = ssub.s32 %s19, 1
        // Predicated region
        $region13: #{tpu_custom_call.1} parent=11 // pred_check
          %p254 = pneg %p66
        $region14: #{tpu_custom_call.1} parent=11 // pred_check_branch
          %256 = sbr.rel (%p254) target = $region16
        $region15: #{tpu_custom_call.1} parent=11 // pred_region
          %s258 = ssub.s32 128, 128
          %259 = vsyncadd [#allocation4], %s258
          %s261 = sshll.u32 [#allocation3], 4
          %s262 = int_to_ptr.vmem [resolvable:$true] %s261
          %264 = dma.hbm_to_vmem [thread:$0]  %s1, 128, %s262, [#allocation4]
        $region16: #{tpu_custom_call.1} parent=11 // pred_fallthru
          _
        // Predicated region
        $region17: #{tpu_custom_call.1} parent=11 // pred_check
          %p265 = pneg %p87
        $region18: #{tpu_custom_call.1} parent=11 // pred_check_branch
          %267 = sbr.rel (%p265) target = $region20
        $region19: #{tpu_custom_call.1} parent=11 // pred_region
          _
        $region20: #{tpu_custom_call.1} parent=11 // pred_fallthru
          _
        // Predicated region
        $region21: #{tpu_custom_call.1} parent=11 // pred_check
          %p268 = pneg %p108
        $region22: #{tpu_custom_call.1} parent=11 // pred_check_branch
          %270 = sbr.rel (%p268) target = $region24
        $region23: #{tpu_custom_call.1} parent=11 // pred_region
          _
        $region24: #{tpu_custom_call.1} parent=11 // pred_fallthru
          _
        // Predicated region
        $region25: #{tpu_custom_call.1} parent=11 // pred_check
          %p271 = pneg %p129
        $region26: #{tpu_custom_call.1} parent=11 // pred_check_branch
          %273 = sbr.rel (%p271) target = $region28
        $region27: #{tpu_custom_call.1} parent=11 // pred_region
          _
        $region28: #{tpu_custom_call.1} parent=11 // pred_fallthru
          _
        // Predicated region
        $region29: #{tpu_custom_call.1} parent=11 // pred_check
          %p274 = pneg %p150
        $region30: #{tpu_custom_call.1} parent=11 // pred_check_branch
          %276 = sbr.rel (%p274) target = $region32
        $region31: #{tpu_custom_call.1} parent=11 // pred_region
          _
        $region32: #{tpu_custom_call.1} parent=11 // pred_fallthru
          _
        // Predicated region
        $region33: #{tpu_custom_call.1} parent=11 // pred_check
          %p277 = pneg %p171
        $region34: #{tpu_custom_call.1} parent=11 // pred_check_branch
          %279 = sbr.rel (%p277) target = $region36
        $region35: #{tpu_custom_call.1} parent=11 // pred_region
          _
        $region36: #{tpu_custom_call.1} parent=11 // pred_fallthru
          _
        // Predicated region
        $region37: #{tpu_custom_call.1} parent=11 // pred_check
          %p280 = pneg %p192
        $region38: #{tpu_custom_call.1} parent=11 // pred_check_branch
          %282 = sbr.rel (%p280) target = $region40
        $region39: #{tpu_custom_call.1} parent=11 // pred_region
          _
        $region40: #{tpu_custom_call.1} parent=11 // pred_fallthru
          _
        // Predicated region
        $region41: #{tpu_custom_call.1} parent=11 // pred_check
          %p283 = pneg %p213
        $region42: #{tpu_custom_call.1} parent=11 // pred_check_branch
          %285 = sbr.rel (%p283) target = $region44
        $region43: #{tpu_custom_call.1} parent=11 // pred_region
          _
        $region44: #{tpu_custom_call.1} parent=11 // pred_fallthru
          _
      $region12: #{tpu_custom_call.1} parent=5 // pred_fallthru
        _
      %p286 = scmp.lt.s32.totalorder %s19, 2
      // Predicated region
      $region45: #{tpu_custom_call.1} parent=5 // pred_check
        %p287 = pneg %p286
      $region46: #{tpu_custom_call.1} parent=5 // pred_check_branch
        %289 = sbr.rel (%p287) target = $region48
      $region47: #{tpu_custom_call.1} parent=5 // pred_region
        // Predicated region
        $region49: #{tpu_custom_call.1} parent=47 // pred_check
          %p290 = pneg %p39
        $region50: #{tpu_custom_call.1} parent=47 // pred_check_branch
          %292 = sbr.rel (%p290) target = $region52
        $region51: #{tpu_custom_call.1} parent=47 // pred_region
          %s293 = sand.u32 %s29, 1
          %s294 = sand.u32 %s29, 1
          %s295 = smul.addr %s294, 32
          %s296 = scalar_lea.vmem [#allocation2], %s295
          %s297 = smul.u32 2, %s19
          %s298 = smul.addr %s297, 8
          %s299 = scalar_lea.vmem %s0, %s298
          // Predicated region
          $region53: #{tpu_custom_call.1} parent=51 // pred_check
            _
          $region54: #{tpu_custom_call.1} parent=51 // pred_check_branch
            %301 = sbr.rel (0) target = $region56
          $region55: #{tpu_custom_call.1} parent=51 // pred_region
            // Predicated region
            $region57: #{tpu_custom_call.1} parent=55 // pred_check
              _
            $region58: #{tpu_custom_call.1} parent=55 // pred_check_branch
              %303 = sbr.rel (0) target = $region60
            $region59: #{tpu_custom_call.1} parent=55 // pred_region
              loop: start=0, step=1, limit=1
              $region61: #{tpu_custom_call.1} parent=59 // loop_pre_header
                _
              $region62: #{tpu_custom_call.1} parent=59 // loop_header
                %s305 = sphi 0, %s309
                %p306 = scmp.ge.s32.totalorder %s305, 1
                %s310 = sphi %s299, %s299
                %s311 = sphi %s296, %s296
              $region63: #{tpu_custom_call.1} parent=59 // loop_header_branch
                %308 = sbr.rel (%p306) target = $region67
              $region64: #{tpu_custom_call.1} parent=59 // loop_body
                %v312 = vld [vmem:[%s310] sm:$0xff]
                %313 = vst [vmem:[%s311] sm:$0xff] %v312
                %v314 = vld [vmem:[%s310 + $0x8] sm:$0xff]
                %315 = vst [vmem:[%s311 + $0x8] sm:$0xff] %v314
                %v316 = vld [vmem:[%s310 + $0x20] sm:$0xff]
                %317 = vst [vmem:[%s311 + $0x10] sm:$0xff] %v316
                %v318 = vld [vmem:[%s310 + $0x28] sm:$0xff]
                %319 = vst [vmem:[%s311 + $0x18] sm:$0xff] %v318
              $region65: #{tpu_custom_call.1} parent=59 // loop_footer
                %s309 = sadd.s32 1, %s305
              $region66: #{tpu_custom_call.1} parent=59 // loop_footer_branch
                %304 = sbr.rel target = $region62
              $region67: #{tpu_custom_call.1} parent=59 // loop_exit
                _
            $region60: #{tpu_custom_call.1} parent=55 // pred_fallthru
              _
            // Predicated region
            $region68: #{tpu_custom_call.1} parent=55 // pred_check
              _
            $region69: #{tpu_custom_call.1} parent=55 // pred_check_branch
              %321 = sbr.rel target = $region71
            $region70: #{tpu_custom_call.1} parent=55 // pred_region
              _
            $region71: #{tpu_custom_call.1} parent=55 // pred_fallthru
              _
          $region56: #{tpu_custom_call.1} parent=51 // pred_fallthru
            _
          %322 = vnop
        $region52: #{tpu_custom_call.1} parent=47 // pred_fallthru
          _
      $region48: #{tpu_custom_call.1} parent=5 // pred_fallthru
        _
      %p323 = scmp.le.s32.totalorder 1, %s19
      %p324 = scmp.lt.s32.totalorder %s19, 3
      %p325 = pnand %p323, %p324
      %p326 = pneg %p325
      // Predicated region
      $region72: #{tpu_custom_call.1} parent=5 // pred_check
        _
      $region73: #{tpu_custom_call.1} parent=5 // pred_check_branch
        %328 = sbr.rel (%p325) target = $region75
      $region74: #{tpu_custom_call.1} parent=5 // pred_region
        %s329 = ssub.s32 %s19, 1
        %s330 = sand.u32 %s32, 1
        %s331 = sand.u32 %s32, 1
        %s332 = smul.addr %s331, 32
        %s333 = scalar_lea.vmem [#allocation2], %s332
        // Predicated region
        $region76: #{tpu_custom_call.1} parent=74 // pred_check
          %p334 = pneg %p45
        $region77: #{tpu_custom_call.1} parent=74 // pred_check_branch
          %336 = sbr.rel (%p334) target = $region79
        $region78: #{tpu_custom_call.1} parent=74 // pred_region
          _
        $region79: #{tpu_custom_call.1} parent=74 // pred_fallthru
          _
        // Predicated region
        $region80: #{tpu_custom_call.1} parent=74 // pred_check
          %p337 = pneg %p66
        $region81: #{tpu_custom_call.1} parent=74 // pred_check_branch
          %339 = sbr.rel (%p337) target = $region83
        $region82: #{tpu_custom_call.1} parent=74 // pred_region
          %340 = dma.done [#allocation4], 128
        $region83: #{tpu_custom_call.1} parent=74 // pred_fallthru
          _
        %s341 = sand.u32 %s32, 1
        %s342 = sand.u32 %s32, 1
        %s343 = smul.addr %s342, 32
        %s344 = scalar_lea.vmem [#allocation2], %s343
        %p345 = pneg %p45
        %p346 = pneg %p42
        %p347 = pneg %p66
        %p348 = pneg %p63
        %p349 = pneg %p87
        %p350 = pneg %p84
        %p351 = pneg %p108
        %p352 = pneg %p105
        %p353 = pneg %p129
        %p354 = pneg %p126
        %p355 = pneg %p150
        %p356 = pneg %p147
        %p357 = pneg %p171
        %p358 = pneg %p168
        %p359 = pneg %p192
        %p360 = pneg %p189
        %p361 = pneg %p213
        %p362 = pneg %p210
        %p363 = pneg %p239
        %p364 = pneg %p236
        %s365 = sand.u32 %s226, 1
        %s366 = scalar_lea.sflag [#allocation5], %s365
        %s367 = sand.u32 %s226, 1
        %s368 = smul.addr %s367, 32
        %s369 = scalar_lea.vmem [#allocation6], %s368
        %s370 = smul.u32 2, %s24
        %s371 = smul.u32 2, %s24
        %v372 = vld [vmem:[%s333] sm:$0xff]
        %v373 = vld [vmem:[%s333 + $0x8] sm:$0xff]
        %v374 = vld [vmem:[%s333 + $0x10] sm:$0x3]
        %v375 = vld [vmem:[%s333 + $0x18] sm:$0x3]
        %v376 = vld [vmem:[%s2] sm:$0x1f]
        %v377 = vld [vmem:[%s4] sm:$0x7]
        %v378 = vld [vmem:[%s6] sm:$0x1f]
        %v379 = vld [vmem:[%s8] sm:$0xff]
        %v380 = vld [vmem:[%s8 + $0x8] sm:$0x3]
        %v381 = vld [vmem:[#allocation3] sm:$0x1f]
        %383 = vset.pattern.permute.xlu0 0
        %384 = vperm.xlu0 %383, %v376
        %v385 = vpop.permute.xlu0 %384
        %vm387 = vcmask 80896
        %v389 = vsel %vm387, %v381, 0
        %vm391 = vcmask 1041408
        %v393 = vsel %vm391, %v374, 0
        %v396 = vsel %vm391, %v375, 0
        %398 = vmatprep.subr.mxu0 %v373
        %399 = vmatpush1.msra.mxu0 %v372
        %400 = vmatprep.subr.mxu0 %v396
        %401 = vmatpush1.msra.mxu0 %v393
        %402 = vmatprep.subr.mxu0 0.0
        %403 = vmatpush1.msra.mxu0 0.0
        %404 = vmatprep.subr.mxu0 0.0
        %405 = vmatpush1.msra.mxu0 0.0
        %406 = vmatprep.subr.mxu0 0.0
        %407 = vmatpush1.msra.mxu0 0.0
        %408 = vmatprep.subr.mxu0 0.0
        %409 = vmatpush1.msra.mxu0 0.0
        %410 = vmatprep.subr.mxu0 0.0
        %411 = vmatpush1.msra.mxu0 0.0
        %412 = vmatprep.subr.mxu0 0.0
        %413 = vmatpush1.msra.mxu0 0.0
        %414 = vmatprep.subr.mxu0 0.0
        %415 = vmatpush1.msra.mxu0 0.0
        %416 = vmatprep.subr.mxu0 0.0
        %417 = vmatpush1.msra.mxu0 0.0
        %418 = vmatprep.subr.mxu0 0.0
        %419 = vmatpush1.msra.mxu0 0.0
        %420 = vmatprep.subr.mxu0 0.0
        %421 = vmatpush1.msra.mxu0 0.0
        %422 = vmatprep.subr.mxu0 0.0
        %423 = vmatpush1.msra.mxu0 0.0
        %424 = vmatprep.subr.mxu0 0.0
        %425 = vmatpush1.msra.mxu0 0.0
        %426 = vmatprep.subr.mxu0 0.0
        %427 = vmatpush1.msra.mxu0 0.0
        %428 = vmatprep.subr.mxu0 0.0
        %429 = vmatpush1.msra.mxu0 0.0
        %430 = vmatprep.subr.mxu0 0.0
        %431 = vmatpush1.msra.mxu0 0.0
        %432 = vmatprep.subr.mxu0 0.0
        %433 = vmatpush1.msra.mxu0 0.0
        %434 = vmatprep.subr.mxu0 0.0
        %435 = vmatpush1.msra.mxu0 0.0
        %436 = vmatprep.subr.mxu0 0.0
        %437 = vmatpush1.msra.mxu0 0.0
        %438 = vmatprep.subr.mxu0 0.0
        %439 = vmatpush1.msra.mxu0 0.0
        %440 = vmatprep.subr.mxu0 0.0
        %441 = vmatpush1.msra.mxu0 0.0
        %442 = vmatprep.subr.mxu0 0.0
        %443 = vmatpush1.msra.mxu0 0.0
        %444 = vmatprep.subr.mxu0 0.0
        %445 = vmatpush1.msra.mxu0 0.0
        %446 = vmatprep.subr.mxu0 0.0
        %447 = vmatpush1.msra.mxu0 0.0
        %448 = vmatprep.subr.mxu0 0.0
        %449 = vmatpush1.msra.mxu0 0.0
        %450 = vmatprep.subr.mxu0 0.0
        %451 = vmatpush1.msra.mxu0 0.0
        %452 = vmatprep.subr.mxu0 0.0
        %453 = vmatpush1.msra.mxu0 0.0
        %454 = vmatprep.subr.mxu0 0.0
        %455 = vmatpush1.msra.mxu0 0.0
        %456 = vmatprep.subr.mxu0 0.0
        %457 = vmatpush1.msra.mxu0 0.0
        %458 = vmatprep.subr.mxu0 0.0
        %459 = vmatpush1.msra.mxu0 0.0
        %460 = vmatprep.subr.mxu0 0.0
        %461 = vmatpush1.msra.mxu0 0.0
        %462 = vmatprep.mubr.f32.mxu0 0.0
        %463 = vmatmul.mubr.f32.gmra.mrb[0].mxu0 %v389
        %v464 = vpop.f32.mrb[0].mxu0
        %v465 = vadd.f32 %v385, %v464
        %v466 = vpop.f32.mrb[0].mxu0
        %v467 = vadd.f32 %v385, %v466
        %468 = vdwg.mxu0
        %v469 = vmax.f32 %v465, 0.0
        %v470 = vmax.f32 %v467, 0.0
        %v471 = vld [vmem:[%s3] sm:$0x7]
        %473 = vset.pattern.permute.xlu0 0
        %474 = vperm.xlu0 %473, %v377
        %v475 = vpop.permute.xlu0 %474
        %vm477 = vcmask 39936
        %v479 = vsel %vm477, %v471, 0
        %vm481 = vcmask 1044480
        %v483 = vsel %vm481, %v469, 0
        %v486 = vsel %vm481, %v470, 0
        %488 = vmatprep.subr.mxu0 %v486
        %489 = vmatpush1.msra.mxu0 %v483
        %490 = vmatprep.subr.mxu0 0.0
        %491 = vmatpush1.msra.mxu0 0.0
        %492 = vmatprep.subr.mxu0 0.0
        %493 = vmatpush1.msra.mxu0 0.0
        %494 = vmatprep.subr.mxu0 0.0
        %495 = vmatpush1.msra.mxu0 0.0
        %496 = vmatprep.subr.mxu0 0.0
        %497 = vmatpush1.msra.mxu0 0.0
        %498 = vmatprep.subr.mxu0 0.0
        %499 = vmatpush1.msra.mxu0 0.0
        %500 = vmatprep.subr.mxu0 0.0
        %501 = vmatpush1.msra.mxu0 0.0
        %502 = vmatprep.subr.mxu0 0.0
        %503 = vmatpush1.msra.mxu0 0.0
        %504 = vmatprep.subr.mxu0 0.0
        %505 = vmatpush1.msra.mxu0 0.0
        %506 = vmatprep.subr.mxu0 0.0
        %507 = vmatpush1.msra.mxu0 0.0
        %508 = vmatprep.subr.mxu0 0.0
        %509 = vmatpush1.msra.mxu0 0.0
        %510 = vmatprep.subr.mxu0 0.0
        %511 = vmatpush1.msra.mxu0 0.0
        %512 = vmatprep.subr.mxu0 0.0
        %513 = vmatpush1.msra.mxu0 0.0
        %514 = vmatprep.subr.mxu0 0.0
        %515 = vmatpush1.msra.mxu0 0.0
        %516 = vmatprep.subr.mxu0 0.0
        %517 = vmatpush1.msra.mxu0 0.0
        %518 = vmatprep.subr.mxu0 0.0
        %519 = vmatpush1.msra.mxu0 0.0
        %520 = vmatprep.subr.mxu0 0.0
        %521 = vmatpush1.msra.mxu0 0.0
        %522 = vmatprep.subr.mxu0 0.0
        %523 = vmatpush1.msra.mxu0 0.0
        %524 = vmatprep.subr.mxu0 0.0
        %525 = vmatpush1.msra.mxu0 0.0
        %526 = vmatprep.subr.mxu0 0.0
        %527 = vmatpush1.msra.mxu0 0.0
        %528 = vmatprep.subr.mxu0 0.0
        %529 = vmatpush1.msra.mxu0 0.0
        %530 = vmatprep.subr.mxu0 0.0
        %531 = vmatpush1.msra.mxu0 0.0
        %532 = vmatprep.subr.mxu0 0.0
        %533 = vmatpush1.msra.mxu0 0.0
        %534 = vmatprep.subr.mxu0 0.0
        %535 = vmatpush1.msra.mxu0 0.0
        %536 = vmatprep.subr.mxu0 0.0
        %537 = vmatpush1.msra.mxu0 0.0
        %538 = vmatprep.subr.mxu0 0.0
        %539 = vmatpush1.msra.mxu0 0.0
        %540 = vmatprep.subr.mxu0 0.0
        %541 = vmatpush1.msra.mxu0 0.0
        %542 = vmatprep.subr.mxu0 0.0
        %543 = vmatpush1.msra.mxu0 0.0
        %544 = vmatprep.subr.mxu0 0.0
        %545 = vmatpush1.msra.mxu0 0.0
        %546 = vmatprep.subr.mxu0 0.0
        %547 = vmatpush1.msra.mxu0 0.0
        %548 = vmatprep.subr.mxu0 0.0
        %549 = vmatpush1.msra.mxu0 0.0
        %550 = vmatprep.subr.mxu0 0.0
        %551 = vmatpush1.msra.mxu0 0.0
        %552 = vmatprep.mubr.f32.mxu0 0.0
        %553 = vmatmul.mubr.f32.gmra.mrb[0].mxu0 %v479
        %v554 = vpop.f32.mrb[0].mxu0
        %v555 = vadd.f32 %v475, %v554
        %v556 = vpop.f32.mrb[0].mxu0
        %v557 = vadd.f32 %v475, %v556
        %558 = vdwg.mxu0
        %v559 = vmax.f32 %v555, 0.0
        %v560 = vmax.f32 %v557, 0.0
        %v561 = vld [vmem:[%s5] sm:$0x1f]
        %563 = vset.pattern.permute.xlu0 0
        %564 = vperm.xlu0 %563, %v378
        %v565 = vpop.permute.xlu0 %564
        %vm567 = vcmask 23552
        %v569 = vsel %vm567, %v561, 0
        %vm571 = vcmask 1042432
        %v573 = vsel %vm571, %v559, 0
        %v576 = vsel %vm571, %v560, 0
        %578 = vmatprep.subr.mxu0 %v576
        %579 = vmatpush1.msra.mxu0 %v573
        %580 = vmatprep.subr.mxu0 0.0
        %581 = vmatpush1.msra.mxu0 0.0
        %582 = vmatprep.subr.mxu0 0.0
        %583 = vmatpush1.msra.mxu0 0.0
        %584 = vmatprep.subr.mxu0 0.0
        %585 = vmatpush1.msra.mxu0 0.0
        %586 = vmatprep.subr.mxu0 0.0
        %587 = vmatpush1.msra.mxu0 0.0
        %588 = vmatprep.subr.mxu0 0.0
        %589 = vmatpush1.msra.mxu0 0.0
        %590 = vmatprep.subr.mxu0 0.0
        %591 = vmatpush1.msra.mxu0 0.0
        %592 = vmatprep.subr.mxu0 0.0
        %593 = vmatpush1.msra.mxu0 0.0
        %594 = vmatprep.subr.mxu0 0.0
        %595 = vmatpush1.msra.mxu0 0.0
        %596 = vmatprep.subr.mxu0 0.0
        %597 = vmatpush1.msra.mxu0 0.0
        %598 = vmatprep.subr.mxu0 0.0
        %599 = vmatpush1.msra.mxu0 0.0
        %600 = vmatprep.subr.mxu0 0.0
        %601 = vmatpush1.msra.mxu0 0.0
        %602 = vmatprep.subr.mxu0 0.0
        %603 = vmatpush1.msra.mxu0 0.0
        %604 = vmatprep.subr.mxu0 0.0
        %605 = vmatpush1.msra.mxu0 0.0
        %606 = vmatprep.subr.mxu0 0.0
        %607 = vmatpush1.msra.mxu0 0.0
        %608 = vmatprep.subr.mxu0 0.0
        %609 = vmatpush1.msra.mxu0 0.0
        %610 = vmatprep.subr.mxu0 0.0
        %611 = vmatpush1.msra.mxu0 0.0
        %612 = vmatprep.subr.mxu0 0.0
        %613 = vmatpush1.msra.mxu0 0.0
        %614 = vmatprep.subr.mxu0 0.0
        %615 = vmatpush1.msra.mxu0 0.0
        %616 = vmatprep.subr.mxu0 0.0
        %617 = vmatpush1.msra.mxu0 0.0
        %618 = vmatprep.subr.mxu0 0.0
        %619 = vmatpush1.msra.mxu0 0.0
        %620 = vmatprep.subr.mxu0 0.0
        %621 = vmatpush1.msra.mxu0 0.0
        %622 = vmatprep.subr.mxu0 0.0
        %623 = vmatpush1.msra.mxu0 0.0
        %624 = vmatprep.subr.mxu0 0.0
        %625 = vmatpush1.msra.mxu0 0.0
        %626 = vmatprep.subr.mxu0 0.0
        %627 = vmatpush1.msra.mxu0 0.0
        %628 = vmatprep.subr.mxu0 0.0
        %629 = vmatpush1.msra.mxu0 0.0
        %630 = vmatprep.subr.mxu0 0.0
        %631 = vmatpush1.msra.mxu0 0.0
        %632 = vmatprep.subr.mxu0 0.0
        %633 = vmatpush1.msra.mxu0 0.0
        %634 = vmatprep.subr.mxu0 0.0
        %635 = vmatpush1.msra.mxu0 0.0
        %636 = vmatprep.subr.mxu0 0.0
        %637 = vmatpush1.msra.mxu0 0.0
        %638 = vmatprep.subr.mxu0 0.0
        %639 = vmatpush1.msra.mxu0 0.0
        %640 = vmatprep.subr.mxu0 0.0
        %641 = vmatpush1.msra.mxu0 0.0
        %642 = vmatprep.mubr.f32.mxu0 0.0
        %643 = vmatmul.mubr.f32.gmra.mrb[0].mxu0 %v569
        %v644 = vpop.f32.mrb[0].mxu0
        %v645 = vadd.f32 %v565, %v644
        %v646 = vpop.f32.mrb[0].mxu0
        %v647 = vadd.f32 %v565, %v646
        %648 = vdwg.mxu0
        %v649 = vmax.f32 %v645, 0.0
        %v650 = vmax.f32 %v647, 0.0
        %v651 = vld [vmem:[%s7] sm:$0xff]
        %v652 = vld [vmem:[%s7 + $0x8] sm:$0x3]
        %654 = vset.pattern.permute.xlu0 0
        %655 = vperm.xlu0 %654, %v379
        %v656 = vpop.permute.xlu0 %655
        %659 = vset.pattern.permute.xlu0 0
        %660 = vperm.xlu0 %659, %v380
        %v661 = vpop.permute.xlu0 %660
        %v664 = vsel %vm477, %v651, 0
        %v667 = vsel %vm477, %v652, 0
        %v670 = vsel %vm481, %v649, 0
        %v673 = vsel %vm481, %v650, 0
        %675 = vmatprep.subr.mxu0 %v673
        %676 = vmatpush1.msra.mxu0 %v670
        %677 = vmatprep.subr.mxu0 0.0
        %678 = vmatpush1.msra.mxu0 0.0
        %679 = vmatprep.subr.mxu0 0.0
        %680 = vmatpush1.msra.mxu0 0.0
        %681 = vmatprep.subr.mxu0 0.0
        %682 = vmatpush1.msra.mxu0 0.0
        %683 = vmatprep.subr.mxu0 0.0
        %684 = vmatpush1.msra.mxu0 0.0
        %685 = vmatprep.subr.mxu0 0.0
        %686 = vmatpush1.msra.mxu0 0.0
        %687 = vmatprep.subr.mxu0 0.0
        %688 = vmatpush1.msra.mxu0 0.0
        %689 = vmatprep.subr.mxu0 0.0
        %690 = vmatpush1.msra.mxu0 0.0
        %691 = vmatprep.subr.mxu0 0.0
        %692 = vmatpush1.msra.mxu0 0.0
        %693 = vmatprep.subr.mxu0 0.0
        %694 = vmatpush1.msra.mxu0 0.0
        %695 = vmatprep.subr.mxu0 0.0
        %696 = vmatpush1.msra.mxu0 0.0
        %697 = vmatprep.subr.mxu0 0.0
        %698 = vmatpush1.msra.mxu0 0.0
        %699 = vmatprep.subr.mxu0 0.0
        %700 = vmatpush1.msra.mxu0 0.0
        %701 = vmatprep.subr.mxu0 0.0
        %702 = vmatpush1.msra.mxu0 0.0
        %703 = vmatprep.subr.mxu0 0.0
        %704 = vmatpush1.msra.mxu0 0.0
        %705 = vmatprep.subr.mxu0 0.0
        %706 = vmatpush1.msra.mxu0 0.0
        %707 = vmatprep.subr.mxu0 0.0
        %708 = vmatpush1.msra.mxu0 0.0
        %709 = vmatprep.subr.mxu0 0.0
        %710 = vmatpush1.msra.mxu0 0.0
        %711 = vmatprep.subr.mxu0 0.0
        %712 = vmatpush1.msra.mxu0 0.0
        %713 = vmatprep.subr.mxu0 0.0
        %714 = vmatpush1.msra.mxu0 0.0
        %715 = vmatprep.subr.mxu0 0.0
        %716 = vmatpush1.msra.mxu0 0.0
        %717 = vmatprep.subr.mxu0 0.0
        %718 = vmatpush1.msra.mxu0 0.0
        %719 = vmatprep.subr.mxu0 0.0
        %720 = vmatpush1.msra.mxu0 0.0
        %721 = vmatprep.subr.mxu0 0.0
        %722 = vmatpush1.msra.mxu0 0.0
        %723 = vmatprep.subr.mxu0 0.0
        %724 = vmatpush1.msra.mxu0 0.0
        %725 = vmatprep.subr.mxu0 0.0
        %726 = vmatpush1.msra.mxu0 0.0
        %727 = vmatprep.subr.mxu0 0.0
        %728 = vmatpush1.msra.mxu0 0.0
        %729 = vmatprep.subr.mxu0 0.0
        %730 = vmatpush1.msra.mxu0 0.0
        %731 = vmatprep.subr.mxu0 0.0
        %732 = vmatpush1.msra.mxu0 0.0
        %733 = vmatprep.subr.mxu0 0.0
        %734 = vmatpush1.msra.mxu0 0.0
        %735 = vmatprep.subr.mxu0 0.0
        %736 = vmatpush1.msra.mxu0 0.0
        %737 = vmatprep.subr.mxu0 0.0
        %738 = vmatpush1.msra.mxu0 0.0
        %739 = vmatprep.mubr.f32.mxu0 0.0
        %740 = vmatmul.mubr.f32.gmra.mrb[0].mxu0 %v664
        %v741 = vpop.f32.mrb[0].mxu0
        %v742 = vadd.f32 %v656, %v741
        %v743 = vpop.f32.mrb[0].mxu0
        %v744 = vadd.f32 %v656, %v743
        %745 = vmatprep.mubr.f32.mxu0 0.0
        %746 = vmatmul.mubr.f32.gmra.mrb[0].mxu0 %v667
        %v747 = vpop.f32.mrb[0].mxu0
        %v748 = vadd.f32 %v661, %v747
        %v749 = vpop.f32.mrb[0].mxu0
        %v750 = vadd.f32 %v661, %v749
        %751 = vdwg.mxu0
        %v752 = vmax.f32 %v742, 0.0
        %v753 = vmax.f32 %v744, 0.0
        %v754 = vmax.f32 %v748, 0.0
        %v755 = vmax.f32 %v750, 0.0
        %756 = vst [vmem:[%s369] sm:$0xff] %v752
        %757 = vst [vmem:[%s369 + $0x8] sm:$0xff] %v753
        %758 = vst [vmem:[%s369 + $0x10] sm:$0x3] %v754
        %759 = vst [vmem:[%s369 + $0x18] sm:$0x3] %v755
        %s760 = sand.u32 %s226, 1
        %s761 = scalar_lea.sflag [#allocation5], %s760
        %s762 = sand.u32 %s226, 1
        %s763 = smul.addr %s762, 32
        %s764 = scalar_lea.vmem [#allocation6], %s763
        // Predicated region
        $region84: #{tpu_custom_call.1} parent=74 // pred_check
          %p765 = pneg %p236
        $region85: #{tpu_custom_call.1} parent=74 // pred_check_branch
          %767 = sbr.rel (%p765) target = $region87
        $region86: #{tpu_custom_call.1} parent=74 // pred_region
          %s768 = smul.u32 2, %s24
          %s770 = ssub.s32 512, 512
          %771 = vsyncadd %s761, %s770
          %s772 = smul.addr %s768, 128
          %s773 = scalar_lea.hbm %s9, %s772
          %s774 = sshll.u32 %s764, 4
          %s775 = int_to_ptr.vmem [resolvable:$true] %s774
          %780 = dma.vmem_to_hbm [thread:$0]  %s775, 512, %s773, %s761, 256, 512, 16
        $region87: #{tpu_custom_call.1} parent=74 // pred_fallthru
          _
      $region75: #{tpu_custom_call.1} parent=5 // pred_fallthru
        _
      %p781 = scmp.le.s32.totalorder 2, %s19
      // Predicated region
      $region88: #{tpu_custom_call.1} parent=5 // pred_check
        %p782 = pneg %p781
      $region89: #{tpu_custom_call.1} parent=5 // pred_check_branch
        %784 = sbr.rel (%p782) target = $region91
      $region90: #{tpu_custom_call.1} parent=5 // pred_region
        %s785 = ssub.s32 %s19, 2
        // Predicated region
        $region92: #{tpu_custom_call.1} parent=90 // pred_check
          %p786 = pneg %p242
        $region93: #{tpu_custom_call.1} parent=90 // pred_check_branch
          %788 = sbr.rel (%p786) target = $region95
        $region94: #{tpu_custom_call.1} parent=90 // pred_region
          %s789 = sand.u32 %s227, 1
          %s790 = scalar_lea.sflag [#allocation5], %s789
          %s791 = sand.u32 %s227, 1
          %s792 = smul.addr %s791, 32
          %s793 = scalar_lea.vmem [#allocation6], %s792
          %794 = dma.done %s790, 512
        $region95: #{tpu_custom_call.1} parent=90 // pred_fallthru
          _
      $region91: #{tpu_custom_call.1} parent=5 // pred_fallthru
        _
    $region6: #{tpu_custom_call.1} parent=1 // loop_footer
      %s23 = sadd.s32 1, %s19
    $region7: #{tpu_custom_call.1} parent=1 // loop_footer_branch
      %18 = sbr.rel target = $region3
    $region8: #{tpu_custom_call.1} parent=1 // loop_exit
      _
    %795 = vsyncpa [#allocation4], 1
    %s796 = scalar_lea.sflag [#allocation4], 1
    %797 = vsyncpa %s796, 1
    %798 = vsyncpa [#allocation5], 1
    %s799 = scalar_lea.sflag [#allocation5], 1
    %800 = vsyncpa %s799, 1

</llo_original>
